<compile_context>
chip_gen: v7x
topology: tpu7x:2x2x1
jax: 0.10.0
libtpu: 0.0.40
codegen_flags: <defaults>
</compile_context>

<pallas_src>
import functools

import jax
import jax.numpy as jnp
from jax.experimental import pallas as pl
from jax.experimental.pallas import tpu as pltpu


def _embedding_gather_kernel(ids_ref, table_hbm, out_ref, buf_ref, sem, *, nbuf):
    # ids_ref   : SMEM (N,)   int32  -- scalar-prefetched flat token ids
    # table_hbm : HBM  (V, D) f32    -- full embedding table, left in HBM
    # out_ref   : VMEM (TQ, D) f32   -- output block for this grid step
    # buf_ref   : VMEM (TQ, D) f32   -- DMA landing buffer for gathered rows
    # sem       : DMA semaphores, one per in-flight row copy
    i = pl.program_id(0)
    tq = out_ref.shape[0]
    base = i * tq

    def row_copy(j):
        # Data-dependent DMA: HBM table row ids[base + j] -> buf row j.
        row = ids_ref[base + j]
        return pltpu.make_async_copy(
            table_hbm.at[pl.ds(row, 1), :],
            buf_ref.at[pl.ds(j, 1), :],
            sem.at[j % nbuf],
        )

    # Prime the pipeline: keep `nbuf` row fetches in flight.
    for j in range(nbuf):          # nbuf is small & static -> unrolled
        row_copy(j).start()

    @pl.loop(0, tq)
    def _(j):
        row_copy(j).wait()

        @pl.when(j + nbuf < tq)
        def _():
            row_copy(j + nbuf).start()

    # One lane-dense, unmasked full-block store of the gathered tile.
    out_ref[...] = buf_ref[...]


def embedding_forward(ids, table, *, tq=256, n_inflight=8):
    """ids: (B, S) int32; table: (V, D) float32 -> (B, S, D) float32."""
    B, S = ids.shape
    V, D = table.shape
    N = B * S

    tq = min(tq, N)
    assert N % tq == 0, "demo assumes batch*seq is a multiple of the token tile"
    assert tq % 8 == 0 or tq == N, "token tile must respect the (8, 128) sublane rule"
    assert D % 128 == 0, "embedding_dim should be a multiple of 128 for lane-dense stores"
    nbuf = min(n_inflight, tq)

    ids_flat = ids.reshape(N).astype(jnp.int32)
    kernel = functools.partial(_embedding_gather_kernel, nbuf=nbuf)

    out_flat = pl.pallas_call(
        kernel,
        out_shape=jax.ShapeDtypeStruct((N, D), table.dtype),
        grid_spec=pltpu.PrefetchScalarGridSpec(
            num_scalar_prefetch=1,          # ids land in SMEM before the grid runs
            grid=(N // tq,),
            in_specs=[
                pl.BlockSpec(memory_space=pl.ANY),   # table stays in HBM, no auto-DMA
            ],
            out_specs=pl.BlockSpec((tq, D), lambda i, ids: (i, 0)),
            scratch_shapes=[
                pltpu.VMEM((tq, D), table.dtype),     # DMA landing buffer
                pltpu.SemaphoreType.DMA((nbuf,)),     # rotating row-copy semaphores
            ],
        ),
        compiler_params=pltpu.CompilerParams(
            dimension_semantics=("parallel",),
        ),
    )(ids_flat, table)

    return out_flat.reshape(B, S, D)


if __name__ == "__main__":
    # Small but tiling-meaningful shapes: N = batch*seq = 1024 tokens
    # -> tq = 256 per grid step, grid = 4 (>= 2 so both v7x TCs get work).
    vocab_size = 1024
    embedding_dim = 256
    batch, seq = 4, 256

    key = jax.random.PRNGKey(0)
    k_ids, k_table = jax.random.split(key)

    # nn.Embedding weights init ~ N(0, 1); deterministic synthetic init here.
    table = jax.random.normal(k_table, (vocab_size, embedding_dim), dtype=jnp.float32)
    x = jax.random.randint(k_ids, (batch, seq), 0, vocab_size, dtype=jnp.int32)

    out = embedding_forward(x, table)
    out = jax.block_until_ready(out)

    # Reference check against a plain JAX gather (bit-exact: pure copy).
    ref = jnp.take(table, x.reshape(-1), axis=0).reshape(batch, seq, embedding_dim)
    assert out.shape == (batch, seq, embedding_dim)
    assert out.dtype == jnp.float32
    assert jnp.array_equal(out, ref), "mismatch vs reference gather"

    print("KERNEL_OK")
</pallas_src>

<mosaic_0001>
module attributes {stable_mosaic.version = 11 : i64} {
  func.func @_embedding_gather_kernel(%arg0: i32, %arg1: memref<1024xi32, #tpu.memory_space<smem>>, %arg2: memref<1024x256xf32, #tpu.memory_space<any>>, %arg3: memref<256x256xf32, #tpu.memory_space<vmem>>, %arg4: memref<256x256xf32, #tpu.memory_space<vmem>>, %arg5: memref<8x!tpu.dma_semaphore, #tpu.memory_space<semaphore_mem>>) attributes {dimension_semantics = [#tpu.dimension_semantics<parallel>], iteration_bounds = array<i64: 4>, scalar_prefetch = 1 : i64, scratch_operands = 2 : i64, tpu.core_type = #tpu.core_type<tc>, window_params = [{}, {transform_indices = @transform_1, window_bounds = array<i64: 256, 256>}]} {
    %c256_i32 = arith.constant 256 : i32
    %0 = arith.muli %arg0, %c256_i32 : i32
    %c0_i32 = arith.constant 0 : i32
    %1 = arith.addi %0, %c0_i32 : i32
    %2 = arith.index_cast %1 : i32 to index
    %3 = memref.load %arg1[%2] : memref<1024xi32, #tpu.memory_space<smem>>
    %c0_i32_0 = arith.constant 0 : i32
    %c0_i32_1 = arith.constant 0 : i32
    %4 = tpu.memref_slice %arg2[%3, %c0_i32_1] : memref<1024x256xf32, #tpu.memory_space<any>> -> memref<1x256xf32, #tpu.memory_space<any>>
    %c0_i32_2 = arith.constant 0 : i32
    %c0_i32_3 = arith.constant 0 : i32
    %5 = tpu.memref_slice %arg4[%c0_i32_2, %c0_i32_3] : memref<256x256xf32, #tpu.memory_space<vmem>> -> memref<1x256xf32, #tpu.memory_space<vmem>>
    %6 = tpu.memref_slice %arg5[%c0_i32_0] : memref<8x!tpu.dma_semaphore, #tpu.memory_space<semaphore_mem>> -> memref<1x!tpu.dma_semaphore, #tpu.memory_space<semaphore_mem>>
    %7 = tpu.memref_squeeze %6 : memref<1x!tpu.dma_semaphore, #tpu.memory_space<semaphore_mem>> -> memref<!tpu.dma_semaphore, #tpu.memory_space<semaphore_mem>>
    tpu.enqueue_dma source(%4 : memref<1x256xf32, #tpu.memory_space<any>>) target(%5 : memref<1x256xf32, #tpu.memory_space<vmem>>) target_semaphore(%7 : memref<!tpu.dma_semaphore, #tpu.memory_space<semaphore_mem>>)
    %c1_i32 = arith.constant 1 : i32
    %8 = arith.addi %0, %c1_i32 : i32
    %9 = arith.index_cast %8 : i32 to index
    %10 = memref.load %arg1[%9] : memref<1024xi32, #tpu.memory_space<smem>>
    %c1_i32_4 = arith.constant 1 : i32
    %c0_i32_5 = arith.constant 0 : i32
    %11 = tpu.memref_slice %arg2[%10, %c0_i32_5] : memref<1024x256xf32, #tpu.memory_space<any>> -> memref<1x256xf32, #tpu.memory_space<any>>
    %c1_i32_6 = arith.constant 1 : i32
    %c0_i32_7 = arith.constant 0 : i32
    %12 = tpu.memref_slice %arg4[%c1_i32_6, %c0_i32_7] : memref<256x256xf32, #tpu.memory_space<vmem>> -> memref<1x256xf32, #tpu.memory_space<vmem>>
    %13 = tpu.memref_slice %arg5[%c1_i32_4] : memref<8x!tpu.dma_semaphore, #tpu.memory_space<semaphore_mem>> -> memref<1x!tpu.dma_semaphore, #tpu.memory_space<semaphore_mem>>
    %14 = tpu.memref_squeeze %13 : memref<1x!tpu.dma_semaphore, #tpu.memory_space<semaphore_mem>> -> memref<!tpu.dma_semaphore, #tpu.memory_space<semaphore_mem>>
    tpu.enqueue_dma source(%11 : memref<1x256xf32, #tpu.memory_space<any>>) target(%12 : memref<1x256xf32, #tpu.memory_space<vmem>>) target_semaphore(%14 : memref<!tpu.dma_semaphore, #tpu.memory_space<semaphore_mem>>)
    %c2_i32 = arith.constant 2 : i32
    %15 = arith.addi %0, %c2_i32 : i32
    %16 = arith.index_cast %15 : i32 to index
    %17 = memref.load %arg1[%16] : memref<1024xi32, #tpu.memory_space<smem>>
    %c2_i32_8 = arith.constant 2 : i32
    %c0_i32_9 = arith.constant 0 : i32
    %18 = tpu.memref_slice %arg2[%17, %c0_i32_9] : memref<1024x256xf32, #tpu.memory_space<any>> -> memref<1x256xf32, #tpu.memory_space<any>>
    %c2_i32_10 = arith.constant 2 : i32
    %c0_i32_11 = arith.constant 0 : i32
    %19 = tpu.memref_slice %arg4[%c2_i32_10, %c0_i32_11] : memref<256x256xf32, #tpu.memory_space<vmem>> -> memref<1x256xf32, #tpu.memory_space<vmem>>
    %20 = tpu.memref_slice %arg5[%c2_i32_8] : memref<8x!tpu.dma_semaphore, #tpu.memory_space<semaphore_mem>> -> memref<1x!tpu.dma_semaphore, #tpu.memory_space<semaphore_mem>>
    %21 = tpu.memref_squeeze %20 : memref<1x!tpu.dma_semaphore, #tpu.memory_space<semaphore_mem>> -> memref<!tpu.dma_semaphore, #tpu.memory_space<semaphore_mem>>
    tpu.enqueue_dma source(%18 : memref<1x256xf32, #tpu.memory_space<any>>) target(%19 : memref<1x256xf32, #tpu.memory_space<vmem>>) target_semaphore(%21 : memref<!tpu.dma_semaphore, #tpu.memory_space<semaphore_mem>>)
    %c3_i32 = arith.constant 3 : i32
    %22 = arith.addi %0, %c3_i32 : i32
    %23 = arith.index_cast %22 : i32 to index
    %24 = memref.load %arg1[%23] : memref<1024xi32, #tpu.memory_space<smem>>
    %c3_i32_12 = arith.constant 3 : i32
    %c0_i32_13 = arith.constant 0 : i32
    %25 = tpu.memref_slice %arg2[%24, %c0_i32_13] : memref<1024x256xf32, #tpu.memory_space<any>> -> memref<1x256xf32, #tpu.memory_space<any>>
    %c3_i32_14 = arith.constant 3 : i32
    %c0_i32_15 = arith.constant 0 : i32
    %26 = tpu.memref_slice %arg4[%c3_i32_14, %c0_i32_15] : memref<256x256xf32, #tpu.memory_space<vmem>> -> memref<1x256xf32, #tpu.memory_space<vmem>>
    %27 = tpu.memref_slice %arg5[%c3_i32_12] : memref<8x!tpu.dma_semaphore, #tpu.memory_space<semaphore_mem>> -> memref<1x!tpu.dma_semaphore, #tpu.memory_space<semaphore_mem>>
    %28 = tpu.memref_squeeze %27 : memref<1x!tpu.dma_semaphore, #tpu.memory_space<semaphore_mem>> -> memref<!tpu.dma_semaphore, #tpu.memory_space<semaphore_mem>>
    tpu.enqueue_dma source(%25 : memref<1x256xf32, #tpu.memory_space<any>>) target(%26 : memref<1x256xf32, #tpu.memory_space<vmem>>) target_semaphore(%28 : memref<!tpu.dma_semaphore, #tpu.memory_space<semaphore_mem>>)
    %c4_i32 = arith.constant 4 : i32
    %29 = arith.addi %0, %c4_i32 : i32
    %30 = arith.index_cast %29 : i32 to index
    %31 = memref.load %arg1[%30] : memref<1024xi32, #tpu.memory_space<smem>>
    %c4_i32_16 = arith.constant 4 : i32
    %c0_i32_17 = arith.constant 0 : i32
    %32 = tpu.memref_slice %arg2[%31, %c0_i32_17] : memref<1024x256xf32, #tpu.memory_space<any>> -> memref<1x256xf32, #tpu.memory_space<any>>
    %c4_i32_18 = arith.constant 4 : i32
    %c0_i32_19 = arith.constant 0 : i32
    %33 = tpu.memref_slice %arg4[%c4_i32_18, %c0_i32_19] : memref<256x256xf32, #tpu.memory_space<vmem>> -> memref<1x256xf32, #tpu.memory_space<vmem>>
    %34 = tpu.memref_slice %arg5[%c4_i32_16] : memref<8x!tpu.dma_semaphore, #tpu.memory_space<semaphore_mem>> -> memref<1x!tpu.dma_semaphore, #tpu.memory_space<semaphore_mem>>
    %35 = tpu.memref_squeeze %34 : memref<1x!tpu.dma_semaphore, #tpu.memory_space<semaphore_mem>> -> memref<!tpu.dma_semaphore, #tpu.memory_space<semaphore_mem>>
    tpu.enqueue_dma source(%32 : memref<1x256xf32, #tpu.memory_space<any>>) target(%33 : memref<1x256xf32, #tpu.memory_space<vmem>>) target_semaphore(%35 : memref<!tpu.dma_semaphore, #tpu.memory_space<semaphore_mem>>)
    %c5_i32 = arith.constant 5 : i32
    %36 = arith.addi %0, %c5_i32 : i32
    %37 = arith.index_cast %36 : i32 to index
    %38 = memref.load %arg1[%37] : memref<1024xi32, #tpu.memory_space<smem>>
    %c5_i32_20 = arith.constant 5 : i32
    %c0_i32_21 = arith.constant 0 : i32
    %39 = tpu.memref_slice %arg2[%38, %c0_i32_21] : memref<1024x256xf32, #tpu.memory_space<any>> -> memref<1x256xf32, #tpu.memory_space<any>>
    %c5_i32_22 = arith.constant 5 : i32
    %c0_i32_23 = arith.constant 0 : i32
    %40 = tpu.memref_slice %arg4[%c5_i32_22, %c0_i32_23] : memref<256x256xf32, #tpu.memory_space<vmem>> -> memref<1x256xf32, #tpu.memory_space<vmem>>
    %41 = tpu.memref_slice %arg5[%c5_i32_20] : memref<8x!tpu.dma_semaphore, #tpu.memory_space<semaphore_mem>> -> memref<1x!tpu.dma_semaphore, #tpu.memory_space<semaphore_mem>>
    %42 = tpu.memref_squeeze %41 : memref<1x!tpu.dma_semaphore, #tpu.memory_space<semaphore_mem>> -> memref<!tpu.dma_semaphore, #tpu.memory_space<semaphore_mem>>
    tpu.enqueue_dma source(%39 : memref<1x256xf32, #tpu.memory_space<any>>) target(%40 : memref<1x256xf32, #tpu.memory_space<vmem>>) target_semaphore(%42 : memref<!tpu.dma_semaphore, #tpu.memory_space<semaphore_mem>>)
    %c6_i32 = arith.constant 6 : i32
    %43 = arith.addi %0, %c6_i32 : i32
    %44 = arith.index_cast %43 : i32 to index
    %45 = memref.load %arg1[%44] : memref<1024xi32, #tpu.memory_space<smem>>
    %c6_i32_24 = arith.constant 6 : i32
    %c0_i32_25 = arith.constant 0 : i32
    %46 = tpu.memref_slice %arg2[%45, %c0_i32_25] : memref<1024x256xf32, #tpu.memory_space<any>> -> memref<1x256xf32, #tpu.memory_space<any>>
    %c6_i32_26 = arith.constant 6 : i32
    %c0_i32_27 = arith.constant 0 : i32
    %47 = tpu.memref_slice %arg4[%c6_i32_26, %c0_i32_27] : memref<256x256xf32, #tpu.memory_space<vmem>> -> memref<1x256xf32, #tpu.memory_space<vmem>>
    %48 = tpu.memref_slice %arg5[%c6_i32_24] : memref<8x!tpu.dma_semaphore, #tpu.memory_space<semaphore_mem>> -> memref<1x!tpu.dma_semaphore, #tpu.memory_space<semaphore_mem>>
    %49 = tpu.memref_squeeze %48 : memref<1x!tpu.dma_semaphore, #tpu.memory_space<semaphore_mem>> -> memref<!tpu.dma_semaphore, #tpu.memory_space<semaphore_mem>>
    tpu.enqueue_dma source(%46 : memref<1x256xf32, #tpu.memory_space<any>>) target(%47 : memref<1x256xf32, #tpu.memory_space<vmem>>) target_semaphore(%49 : memref<!tpu.dma_semaphore, #tpu.memory_space<semaphore_mem>>)
    %c7_i32 = arith.constant 7 : i32
    %50 = arith.addi %0, %c7_i32 : i32
    %51 = arith.index_cast %50 : i32 to index
    %52 = memref.load %arg1[%51] : memref<1024xi32, #tpu.memory_space<smem>>
    %c7_i32_28 = arith.constant 7 : i32
    %c0_i32_29 = arith.constant 0 : i32
    %53 = tpu.memref_slice %arg2[%52, %c0_i32_29] : memref<1024x256xf32, #tpu.memory_space<any>> -> memref<1x256xf32, #tpu.memory_space<any>>
    %c7_i32_30 = arith.constant 7 : i32
    %c0_i32_31 = arith.constant 0 : i32
    %54 = tpu.memref_slice %arg4[%c7_i32_30, %c0_i32_31] : memref<256x256xf32, #tpu.memory_space<vmem>> -> memref<1x256xf32, #tpu.memory_space<vmem>>
    %55 = tpu.memref_slice %arg5[%c7_i32_28] : memref<8x!tpu.dma_semaphore, #tpu.memory_space<semaphore_mem>> -> memref<1x!tpu.dma_semaphore, #tpu.memory_space<semaphore_mem>>
    %56 = tpu.memref_squeeze %55 : memref<1x!tpu.dma_semaphore, #tpu.memory_space<semaphore_mem>> -> memref<!tpu.dma_semaphore, #tpu.memory_space<semaphore_mem>>
    tpu.enqueue_dma source(%53 : memref<1x256xf32, #tpu.memory_space<any>>) target(%54 : memref<1x256xf32, #tpu.memory_space<vmem>>) target_semaphore(%56 : memref<!tpu.dma_semaphore, #tpu.memory_space<semaphore_mem>>)
    %c0_i32_32 = arith.constant 0 : i32
    %c256_i32_33 = arith.constant 256 : i32
    %57 = arith.addi %c0_i32_32, %c256_i32_33 : i32
    %c1_i32_34 = arith.constant 1 : i32
    scf.for %arg6 = %c0_i32_32 to %57 step %c1_i32_34  : i32 {
      %c1_i32_39 = arith.constant 1 : i32
      %60 = arith.muli %arg6, %c1_i32_39 : i32
      %c0_i32_40 = arith.constant 0 : i32
      %61 = arith.addi %c0_i32_40, %60 : i32
      %62 = arith.addi %0, %61 : i32
      %63 = arith.index_cast %62 : i32 to index
      %64 = memref.load %arg1[%63] : memref<1024xi32, #tpu.memory_space<smem>>
      %c8_i32 = arith.constant 8 : i32
      %c0_i32_41 = arith.constant 0 : i32
      %65 = arith.cmpi eq, %c8_i32, %c0_i32_41 : i32
      %c1_i32_42 = arith.constant 1 : i32
      %66 = arith.select %65, %c1_i32_42, %c8_i32 : i32
      %67 = arith.remsi %61, %66 : i32
      %c0_i32_43 = arith.constant 0 : i32
      %68 = arith.cmpi ne, %67, %c0_i32_43 : i32
      %c0_i32_44 = arith.constant 0 : i32
      %69 = arith.cmpi slt, %67, %c0_i32_44 : i32
      %c0_i32_45 = arith.constant 0 : i32
      %70 = arith.cmpi slt, %66, %c0_i32_45 : i32
      %71 = arith.xori %69, %70 : i1
      %72 = arith.andi %71, %68 : i1
      %73 = arith.addi %67, %66 : i32
      %74 = arith.select %72, %73, %67 : i32
      %c0_i32_46 = arith.constant 0 : i32
      %75 = tpu.memref_slice %arg2[%64, %c0_i32_46] : memref<1024x256xf32, #tpu.memory_space<any>> -> memref<1x256xf32, #tpu.memory_space<any>>
      %c0_i32_47 = arith.constant 0 : i32
      %76 = tpu.memref_slice %arg4[%61, %c0_i32_47] : memref<256x256xf32, #tpu.memory_space<vmem>> -> memref<1x256xf32, #tpu.memory_space<vmem>>
      %77 = tpu.memref_slice %arg5[%74] : memref<8x!tpu.dma_semaphore, #tpu.memory_space<semaphore_mem>> -> memref<1x!tpu.dma_semaphore, #tpu.memory_space<semaphore_mem>>
      %78 = tpu.memref_squeeze %77 : memref<1x!tpu.dma_semaphore, #tpu.memory_space<semaphore_mem>> -> memref<!tpu.dma_semaphore, #tpu.memory_space<semaphore_mem>>
      tpu.wait_dma2 semaphore(%78 : memref<!tpu.dma_semaphore, #tpu.memory_space<semaphore_mem>>) src(%75 : memref<1x256xf32, #tpu.memory_space<any>>) dst(%76 : memref<1x256xf32, #tpu.memory_space<vmem>>)
      %c8_i32_48 = arith.constant 8 : i32
      %79 = arith.addi %61, %c8_i32_48 : i32
      %c256_i32_49 = arith.constant 256 : i32
      %80 = arith.cmpi slt, %79, %c256_i32_49 : i32
      %81 = arith.extui %80 : i1 to i32
      %c0_i32_50 = arith.constant 0 : i32
      %82 = arith.cmpi ne, %81, %c0_i32_50 : i32
      scf.if %82 {
        %c8_i32_51 = arith.constant 8 : i32
        %83 = arith.addi %61, %c8_i32_51 : i32
        %84 = arith.addi %0, %83 : i32
        %85 = arith.index_cast %84 : i32 to index
        %86 = memref.load %arg1[%85] : memref<1024xi32, #tpu.memory_space<smem>>
        %c8_i32_52 = arith.constant 8 : i32
        %c0_i32_53 = arith.constant 0 : i32
        %87 = arith.cmpi eq, %c8_i32_52, %c0_i32_53 : i32
        %c1_i32_54 = arith.constant 1 : i32
        %88 = arith.select %87, %c1_i32_54, %c8_i32_52 : i32
        %89 = arith.remsi %83, %88 : i32
        %c0_i32_55 = arith.constant 0 : i32
        %90 = arith.cmpi ne, %89, %c0_i32_55 : i32
        %c0_i32_56 = arith.constant 0 : i32
        %91 = arith.cmpi slt, %89, %c0_i32_56 : i32
        %c0_i32_57 = arith.constant 0 : i32
        %92 = arith.cmpi slt, %88, %c0_i32_57 : i32
        %93 = arith.xori %91, %92 : i1
        %94 = arith.andi %93, %90 : i1
        %95 = arith.addi %89, %88 : i32
        %96 = arith.select %94, %95, %89 : i32
        %c0_i32_58 = arith.constant 0 : i32
        %97 = tpu.memref_slice %arg2[%86, %c0_i32_58] : memref<1024x256xf32, #tpu.memory_space<any>> -> memref<1x256xf32, #tpu.memory_space<any>>
        %c0_i32_59 = arith.constant 0 : i32
        %98 = tpu.memref_slice %arg4[%83, %c0_i32_59] : memref<256x256xf32, #tpu.memory_space<vmem>> -> memref<1x256xf32, #tpu.memory_space<vmem>>
        %99 = tpu.memref_slice %arg5[%96] : memref<8x!tpu.dma_semaphore, #tpu.memory_space<semaphore_mem>> -> memref<1x!tpu.dma_semaphore, #tpu.memory_space<semaphore_mem>>
        %100 = tpu.memref_squeeze %99 : memref<1x!tpu.dma_semaphore, #tpu.memory_space<semaphore_mem>> -> memref<!tpu.dma_semaphore, #tpu.memory_space<semaphore_mem>>
        tpu.enqueue_dma source(%97 : memref<1x256xf32, #tpu.memory_space<any>>) target(%98 : memref<1x256xf32, #tpu.memory_space<vmem>>) target_semaphore(%100 : memref<!tpu.dma_semaphore, #tpu.memory_space<semaphore_mem>>)
      } else {
      }
    }
    %c256_i32_35 = arith.constant 256 : i32
    %c0 = arith.constant 0 : index
    %c0_36 = arith.constant 0 : index
    %58 = vector.load %arg4[%c0, %c0_36] : memref<256x256xf32, #tpu.memory_space<vmem>>, vector<256x256xf32>
    %c0_37 = arith.constant 0 : index
    %c0_38 = arith.constant 0 : index
    %59 = vector.load %arg3[%c0_37, %c0_38] : memref<256x256xf32, #tpu.memory_space<vmem>>, vector<256x256xf32>
    tpu.vector_store %arg3[%c0_37, %c0_38], %58 {strides = array<i32>} : memref<256x256xf32, #tpu.memory_space<vmem>>, vector<256x256xf32>,
    return
  }
  func.func @transform_1(%arg0: i32, %arg1: memref<1024xi32, #tpu.memory_space<smem>>) -> (i32, i32) {
    %c0_i32 = arith.constant 0 : i32
    %c0_i32_0 = arith.constant 0 : i32
    return %arg0, %c0_i32 : i32, i32
  }
}

</mosaic_0001>

<llo_original>
// kernel: tpu_custom_call.1
$region0: #{tpu_custom_call.1}
  #allocation0 [shape = 'u32[]', space=smem, size = 0x4, offset = 0x4, fixed_abs, tag = 'smem constant byte address 0x4 - core index']
  #allocation1 [shape = 'u32[144,128]{1,0:T(1,128)}', space=vmem, size = 0x12000, scoped, tag = 'internal scratch']
  #allocation2 [shape = 'f32[256,256]{1,0:T(8,128)}', space=vmem, size = 0x40000, scoped, tag = 'scratch operand']
  #allocation3 [shape = 's32[8]{0}', space=sflag, size = 0x20, scoped, tag = 'scratch operand']
  #allocation4 [shape = 's32[1]{0}', space=sflag, size = 0x4, scoped, tag = 'scoped memory for tpu_custom_call.1']
  #allocation5 [shape = 'u8[4096]{0}', space=smem, size = 0x1000, scoped, tag = 'prefetched SMEM operand 0']
  #allocation8 [shape = 's32[]', space=sflag, size = 0x4, offset = 0, fixed_abs, tag = 'sflag constant byte address 0x0 - dummy sync flag']
  #allocation9 [shape = 's32[]', space=sflag, size = 0x4, offset = 0, fixed_abs, tag = 'sflag constant byte address 0x0 - dummy sync flag']
  #allocation10 [shape = 's32[]', space=sflag, size = 0x4, offset = 0, fixed_abs, tag = 'sflag constant byte address 0x0 - dummy sync flag']
  #allocation11 [shape = 's32[]', space=sflag, size = 0x4, offset = 0, fixed_abs, tag = 'sflag constant byte address 0x0 - dummy sync flag']
  #allocation12 [shape = 's32[]', space=sflag, size = 0x4, offset = 0, fixed_abs, tag = 'sflag constant byte address 0x0 - dummy sync flag']
  #allocation13 [shape = 's32[]', space=sflag, size = 0x4, offset = 0, fixed_abs, tag = 'sflag constant byte address 0x0 - dummy sync flag']
  #allocation14 [shape = 's32[]', space=sflag, size = 0x4, offset = 0, fixed_abs, tag = 'sflag constant byte address 0x0 - dummy sync flag']
  #allocation15 [shape = 's32[]', space=sflag, size = 0x4, offset = 0, fixed_abs, tag = 'sflag constant byte address 0x0 - dummy sync flag']
  #allocation16 [shape = 's32[]', space=sflag, size = 0x4, offset = 0, fixed_abs, tag = 'sflag constant byte address 0x0 - dummy sync flag']
  %s0 = inlined_call_operand.hbm [shape: s32[1024], index: 0, kind: input, shape index: {}]
  %s1 = inlined_call_operand.hbm [shape: f32[1024,256], index: 1, kind: input, shape index: {}]
  %s2 = inlined_call_operand.hbm [shape: f32[1024,256], index: 2, kind: output, shape index: {}]
  %s3 = sld [smem:[#allocation0]]
  $region36: #{tpu_custom_call.1} parent=0
    _
  %s5 = ssub.s32 1, %s3
  %s6 = scalar_select 0, %s5, %s3
  %8 = dma.hbm_to_smem %s0, 128, [#allocation5], [#allocation4]
  %9 = dma.done [#allocation4], 128
  %10 = sfence
  $region1: #{tpu_custom_call.1} parent=0
    #allocation6 [shape = 'u8[524288]{0}', space=vmem, size = 0x80000, scoped, tag = 'output window, operand 0']
    #allocation7 [shape = 's32[2]{0}', space=sflag, size = 0x8, scoped, tag = 'scoped memory for tpu_custom_call.1']
    %11 = vsyncpa [#allocation7], 0
    %s12 = scalar_lea.sflag [#allocation7], 1
    %13 = vsyncpa %s12, 0
    loop: start=0, step=1, limit=5
    $region2: #{tpu_custom_call.1} parent=1 // loop_pre_header
      _
    $region3: #{tpu_custom_call.1} parent=1 // loop_header
      %s15 = sphi 0, %s19
      %p16 = scmp.ge.s32.totalorder %s15, 5
      %s24 = sphi 0, %s26
      %s27 = sphi 0, %s24
      %s37 = sphi 0, %s27
    $region4: #{tpu_custom_call.1} parent=1 // loop_header_branch
      %18 = sbr.rel (%p16) target = $region8
    $region5: #{tpu_custom_call.1} parent=1 // loop_body
      %s20 = ssub.s32 %s15, 1
      %s21 = sadd.s32 %s15, 1
      %s22 = ssub.s32 %s15, %s21
      %p23 = scmp.eq.s32.totalorder %s22, 0
      %s25 = sadd.s32 %s24, 1
      %s26 = scalar_select %p23, %s24, %s25
      %p28 = pneg %p23
      %p29 = scmp.eq.s32.totalorder %s15, 3
      %p30 = por %p28, %p29
      %p31 = scmp.ne.s32.totalorder %s24, %s27
      %p32 = scmp.eq.s32.totalorder %s15, 0
      %p33 = por %p31, %p32
      %p34 = scmp.ne.s32.totalorder %s24, %s27
      %p35 = scmp.eq.s32.totalorder %s20, 3
      %p36 = por %p34, %p35
      %p38 = scmp.ne.s32.totalorder %s27, %s37
      %p39 = scmp.eq.s32.totalorder %s20, 0
      %p40 = por %p38, %p39
      %p41 = scmp.lt.s32.totalorder %s15, 4
      // Predicated region
      $region9: #{tpu_custom_call.1} parent=5 // pred_check
        %p42 = pneg %p41
      $region10: #{tpu_custom_call.1} parent=5 // pred_check_branch
        %44 = sbr.rel (%p42) target = $region12
      $region11: #{tpu_custom_call.1} parent=5 // pred_region
        %p45 = pneg %p33
        %p46 = pneg %p30
        %s47 = sand.u32 %s24, 1
        %s48 = scalar_lea.sflag [#allocation7], %s47
        %s49 = sand.u32 %s24, 1
        %s50 = smul.addr %s49, 512
        %s51 = scalar_lea.vmem [#allocation6], %s50
        %s52 = smul.u32 32, %s15
        %s53 = smul.u32 %s15, 256
        %s54 = sld [smem:[#allocation5 + %s53]]
        %s55 = sshrl.u32 %s54, 3
        %s56 = sand.u32 %s54, 7
        %s57 = smul.u32 %s55, 16
        %s58 = sadd.s32 %s56, %s57
        %s59 = smul.addr %s58, 16
        %s60 = scalar_lea.hbm %s1, %s59
        %s62 = sshll.u32 [#allocation2], 4
        %s63 = int_to_ptr.vmem [resolvable:$true] %s62
        %65 = dma.hbm_to_vmem [thread:$0]  %s60, 32, %s63, [#allocation3], 128, 128, 1
        %s66 = sadd.s32 %s53, 1
        %s67 = sld [smem:[#allocation5 + %s66]]
        %s68 = sshrl.u32 %s67, 3
        %s69 = sand.u32 %s67, 7
        %s70 = smul.u32 %s68, 16
        %s71 = sadd.s32 %s69, %s70
        %s72 = smul.addr %s71, 16
        %s73 = scalar_lea.hbm %s1, %s72
        %s74 = scalar_lea.vmem [#allocation2], 1
        %s75 = scalar_lea.sflag [#allocation3], 1
        %s77 = sshll.u32 %s74, 4
        %s78 = int_to_ptr.vmem [resolvable:$true] %s77
        %80 = dma.hbm_to_vmem [thread:$0]  %s73, 32, %s78, %s75, 128, 128, 1
        %s81 = sadd.s32 %s53, 2
        %s82 = sld [smem:[#allocation5 + %s81]]
        %s83 = sshrl.u32 %s82, 3
        %s84 = sand.u32 %s82, 7
        %s85 = smul.u32 %s83, 16
        %s86 = sadd.s32 %s84, %s85
        %s87 = smul.addr %s86, 16
        %s88 = scalar_lea.hbm %s1, %s87
        %s89 = scalar_lea.vmem [#allocation2], 2
        %s90 = scalar_lea.sflag [#allocation3], 2
        %s92 = sshll.u32 %s89, 4
        %s93 = int_to_ptr.vmem [resolvable:$true] %s92
        %95 = dma.hbm_to_vmem [thread:$0]  %s88, 32, %s93, %s90, 128, 128, 1
        %s96 = sadd.s32 %s53, 3
        %s97 = sld [smem:[#allocation5 + %s96]]
        %s98 = sshrl.u32 %s97, 3
        %s99 = sand.u32 %s97, 7
        %s100 = smul.u32 %s98, 16
        %s101 = sadd.s32 %s99, %s100
        %s102 = smul.addr %s101, 16
        %s103 = scalar_lea.hbm %s1, %s102
        %s104 = scalar_lea.vmem [#allocation2], 3
        %s105 = scalar_lea.sflag [#allocation3], 3
        %s107 = sshll.u32 %s104, 4
        %s108 = int_to_ptr.vmem [resolvable:$true] %s107
        %110 = dma.hbm_to_vmem [thread:$0]  %s103, 32, %s108, %s105, 128, 128, 1
        %s111 = sadd.s32 %s53, 4
        %s112 = sld [smem:[#allocation5 + %s111]]
        %s113 = sshrl.u32 %s112, 3
        %s114 = sand.u32 %s112, 7
        %s115 = smul.u32 %s113, 16
        %s116 = sadd.s32 %s114, %s115
        %s117 = smul.addr %s116, 16
        %s118 = scalar_lea.hbm %s1, %s117
        %s119 = scalar_lea.vmem [#allocation2], 4
        %s120 = scalar_lea.sflag [#allocation3], 4
        %s122 = sshll.u32 %s119, 4
        %s123 = int_to_ptr.vmem [resolvable:$true] %s122
        %125 = dma.hbm_to_vmem [thread:$0]  %s118, 32, %s123, %s120, 128, 128, 1
        %s126 = sadd.s32 %s53, 5
        %s127 = sld [smem:[#allocation5 + %s126]]
        %s128 = sshrl.u32 %s127, 3
        %s129 = sand.u32 %s127, 7
        %s130 = smul.u32 %s128, 16
        %s131 = sadd.s32 %s129, %s130
        %s132 = smul.addr %s131, 16
        %s133 = scalar_lea.hbm %s1, %s132
        %s134 = scalar_lea.vmem [#allocation2], 5
        %s135 = scalar_lea.sflag [#allocation3], 5
        %s137 = sshll.u32 %s134, 4
        %s138 = int_to_ptr.vmem [resolvable:$true] %s137
        %140 = dma.hbm_to_vmem [thread:$0]  %s133, 32, %s138, %s135, 128, 128, 1
        %s141 = sadd.s32 %s53, 6
        %s142 = sld [smem:[#allocation5 + %s141]]
        %s143 = sshrl.u32 %s142, 3
        %s144 = sand.u32 %s142, 7
        %s145 = smul.u32 %s143, 16
        %s146 = sadd.s32 %s144, %s145
        %s147 = smul.addr %s146, 16
        %s148 = scalar_lea.hbm %s1, %s147
        %s149 = scalar_lea.vmem [#allocation2], 6
        %s150 = scalar_lea.sflag [#allocation3], 6
        %s152 = sshll.u32 %s149, 4
        %s153 = int_to_ptr.vmem [resolvable:$true] %s152
        %155 = dma.hbm_to_vmem [thread:$0]  %s148, 32, %s153, %s150, 128, 128, 1
        %s156 = sadd.s32 %s53, 7
        %s157 = sld [smem:[#allocation5 + %s156]]
        %s158 = sshrl.u32 %s157, 3
        %s159 = sand.u32 %s157, 7
        %s160 = smul.u32 %s158, 16
        %s161 = sadd.s32 %s159, %s160
        %s162 = smul.addr %s161, 16
        %s163 = scalar_lea.hbm %s1, %s162
        %s164 = scalar_lea.vmem [#allocation2], 7
        %s165 = scalar_lea.sflag [#allocation3], 7
        %s167 = sshll.u32 %s164, 4
        %s168 = int_to_ptr.vmem [resolvable:$true] %s167
        %170 = dma.hbm_to_vmem [thread:$0]  %s163, 32, %s168, %s165, 128, 128, 1
        loop: start=0, step=1, limit=256
        $region13: #{tpu_custom_call.1} parent=11 // loop_pre_header
          _
        $region14: #{tpu_custom_call.1} parent=11 // loop_header
          %s172 = sphi 0, %s176
          %p173 = scmp.ge.s32.totalorder %s172, 256
        $region15: #{tpu_custom_call.1} parent=11 // loop_header_branch
          %175 = sbr.rel (%p173) target = $region19
        $region16: #{tpu_custom_call.1} parent=11 // loop_body
          %s177 = sadd.s32 %s53, %s172
          %s178 = sld [smem:[#allocation5 + %s177]]
          %p179 = scmp.lt.s32.totalorder %s172, 0
          %s180 = ssub.s32 0, %s172
          %s181 = scalar_select %p179, %s180, %s172
          %s182 = sand.u32 %s181, 7
          %s183 = ssub.s32 0, %s182
          %s184 = scalar_select %p179, %s183, %s182
          %p185 = scmp.ne.s32.totalorder %s184, 0
          %p186 = scmp.lt.s32.totalorder %s184, 0
          %p187 = pnand %p186, %p185
          %p188 = pneg %p187
          %s189 = sadd.s32 %s184, 8
          %s190 = scalar_select %p188, %s189, %s184
          %s191 = scalar_lea.sflag [#allocation3], %s190
          %s192 = smul.u32 1, 2
          %s193 = sshll.u32 %s192, 4
          %194 = dma.done %s191, %s193
          %s195 = sadd.s32 %s172, 8
          %p196 = scmp.lt.s32.totalorder %s195, 256
          // Predicated region
          $region20: #{tpu_custom_call.1} parent=16 // pred_check
            %p197 = pneg %p196
          $region21: #{tpu_custom_call.1} parent=16 // pred_check_branch
            %199 = sbr.rel (%p197) target = $region23
          $region22: #{tpu_custom_call.1} parent=16 // pred_region
            %s200 = sadd.s32 %s53, %s195
            %s201 = sld [smem:[#allocation5 + %s200]]
            %p202 = scmp.lt.s32.totalorder %s195, 0
            %s203 = ssub.s32 0, %s195
            %s204 = scalar_select %p202, %s203, %s195
            %s205 = sand.u32 %s204, 7
            %s206 = ssub.s32 0, %s205
            %s207 = scalar_select %p202, %s206, %s205
            %p208 = scmp.ne.s32.totalorder %s207, 0
            %p209 = scmp.lt.s32.totalorder %s207, 0
            %p210 = pnand %p209, %p208
            %p211 = pneg %p210
            %s212 = sadd.s32 %s207, 8
            %s213 = scalar_select %p211, %s212, %s207
            %s214 = sshrl.u32 %s201, 3
            %s215 = sand.u32 %s201, 7
            %s216 = smul.u32 %s214, 16
            %s217 = sadd.s32 %s215, %s216
            %s218 = smul.addr %s217, 16
            %s219 = scalar_lea.hbm %s1, %s218
            %s220 = sshrl.u32 %s195, 3
            %s221 = sand.u32 %s195, 7
            %s222 = smul.u32 %s220, 16
            %s223 = sadd.s32 %s221, %s222
            %s224 = scalar_lea.vmem [#allocation2], %s223
            %s225 = scalar_lea.sflag [#allocation3], %s213
            %s227 = sshll.u32 %s224, 4
            %s228 = int_to_ptr.vmem [resolvable:$true] %s227
            %230 = dma.hbm_to_vmem [thread:$0]  %s219, 32, %s228, %s225, 128, 128, 1
          $region23: #{tpu_custom_call.1} parent=16 // pred_fallthru
            _
        $region17: #{tpu_custom_call.1} parent=11 // loop_footer
          %s176 = sadd.s32 1, %s172
        $region18: #{tpu_custom_call.1} parent=11 // loop_footer_branch
          %171 = sbr.rel target = $region14
        $region19: #{tpu_custom_call.1} parent=11 // loop_exit
          _
        %v231 = vld [vmem:[#allocation2] sm:$0xff]
        %v232 = vld [vmem:[#allocation2 + $0x8] sm:$0xff]
        %v233 = vld [vmem:[#allocation2 + $0x10] sm:$0xff]
        %v234 = vld [vmem:[#allocation2 + $0x18] sm:$0xff]
        %v235 = vld [vmem:[#allocation2 + $0x20] sm:$0xff]
        %v236 = vld [vmem:[#allocation2 + $0x28] sm:$0xff]
        %v237 = vld [vmem:[#allocation2 + $0x30] sm:$0xff]
        %v238 = vld [vmem:[#allocation2 + $0x38] sm:$0xff]
        %v239 = vld [vmem:[#allocation2 + $0x40] sm:$0xff]
        %v240 = vld [vmem:[#allocation2 + $0x48] sm:$0xff]
        %v241 = vld [vmem:[#allocation2 + $0x50] sm:$0xff]
        %v242 = vld [vmem:[#allocation2 + $0x58] sm:$0xff]
        %v243 = vld [vmem:[#allocation2 + $0x60] sm:$0xff]
        %v244 = vld [vmem:[#allocation2 + $0x68] sm:$0xff]
        %v245 = vld [vmem:[#allocation2 + $0x70] sm:$0xff]
        %v246 = vld [vmem:[#allocation2 + $0x78] sm:$0xff]
        %v247 = vld [vmem:[#allocation2 + $0x80] sm:$0xff]
        %v248 = vld [vmem:[#allocation2 + $0x88] sm:$0xff]
        %v249 = vld [vmem:[#allocation2 + $0x90] sm:$0xff]
        %v250 = vld [vmem:[#allocation2 + $0x98] sm:$0xff]
        %v251 = vld [vmem:[#allocation2 + $0xa0] sm:$0xff]
        %v252 = vld [vmem:[#allocation2 + $0xa8] sm:$0xff]
        %v253 = vld [vmem:[#allocation2 + $0xb0] sm:$0xff]
        %v254 = vld [vmem:[#allocation2 + $0xb8] sm:$0xff]
        %v255 = vld [vmem:[#allocation2 + $0xc0] sm:$0xff]
        %v256 = vld [vmem:[#allocation2 + $0xc8] sm:$0xff]
        %v257 = vld [vmem:[#allocation2 + $0xd0] sm:$0xff]
        %v258 = vld [vmem:[#allocation2 + $0xd8] sm:$0xff]
        %v259 = vld [vmem:[#allocation2 + $0xe0] sm:$0xff]
        %v260 = vld [vmem:[#allocation2 + $0xe8] sm:$0xff]
        %v261 = vld [vmem:[#allocation2 + $0xf0] sm:$0xff]
        %v262 = vld [vmem:[#allocation2 + $0xf8] sm:$0xff]
        %v263 = vld [vmem:[#allocation2 + $0x100] sm:$0xff]
        %v264 = vld [vmem:[#allocation2 + $0x108] sm:$0xff]
        %v265 = vld [vmem:[#allocation2 + $0x110] sm:$0xff]
        %v266 = vld [vmem:[#allocation2 + $0x118] sm:$0xff]
        %v267 = vld [vmem:[#allocation2 + $0x120] sm:$0xff]
        %v268 = vld [vmem:[#allocation2 + $0x128] sm:$0xff]
        %v269 = vld [vmem:[#allocation2 + $0x130] sm:$0xff]
        %v270 = vld [vmem:[#allocation2 + $0x138] sm:$0xff]
        %v271 = vld [vmem:[#allocation2 + $0x140] sm:$0xff]
        %v272 = vld [vmem:[#allocation2 + $0x148] sm:$0xff]
        %v273 = vld [vmem:[#allocation2 + $0x150] sm:$0xff]
        %v274 = vld [vmem:[#allocation2 + $0x158] sm:$0xff]
        %v275 = vld [vmem:[#allocation2 + $0x160] sm:$0xff]
        %v276 = vld [vmem:[#allocation2 + $0x168] sm:$0xff]
        %v277 = vld [vmem:[#allocation2 + $0x170] sm:$0xff]
        %v278 = vld [vmem:[#allocation2 + $0x178] sm:$0xff]
        %v279 = vld [vmem:[#allocation2 + $0x180] sm:$0xff]
        %v280 = vld [vmem:[#allocation2 + $0x188] sm:$0xff]
        %v281 = vld [vmem:[#allocation2 + $0x190] sm:$0xff]
        %v282 = vld [vmem:[#allocation2 + $0x198] sm:$0xff]
        %v283 = vld [vmem:[#allocation2 + $0x1a0] sm:$0xff]
        %v284 = vld [vmem:[#allocation2 + $0x1a8] sm:$0xff]
        %v285 = vld [vmem:[#allocation2 + $0x1b0] sm:$0xff]
        %v286 = vld [vmem:[#allocation2 + $0x1b8] sm:$0xff]
        %v287 = vld [vmem:[#allocation2 + $0x1c0] sm:$0xff]
        %v288 = vld [vmem:[#allocation2 + $0x1c8] sm:$0xff]
        %v289 = vld [vmem:[#allocation2 + $0x1d0] sm:$0xff]
        %v290 = vld [vmem:[#allocation2 + $0x1d8] sm:$0xff]
        %v291 = vld [vmem:[#allocation2 + $0x1e0] sm:$0xff]
        %v292 = vld [vmem:[#allocation2 + $0x1e8] sm:$0xff]
        %v293 = vld [vmem:[#allocation2 + $0x1f0] sm:$0xff]
        %v294 = vld [vmem:[#allocation2 + $0x1f8] sm:$0xff]
        %295 = vst [vmem:[%s51] sm:$0xff] %v231
        %296 = vst [vmem:[%s51 + $0x8] sm:$0xff] %v232
        %297 = vst [vmem:[%s51 + $0x10] sm:$0xff] %v233
        %298 = vst [vmem:[%s51 + $0x18] sm:$0xff] %v234
        %299 = vst [vmem:[%s51 + $0x20] sm:$0xff] %v235
        %300 = vst [vmem:[%s51 + $0x28] sm:$0xff] %v236
        %301 = vst [vmem:[%s51 + $0x30] sm:$0xff] %v237
        %302 = vst [vmem:[%s51 + $0x38] sm:$0xff] %v238
        %303 = vst [vmem:[%s51 + $0x40] sm:$0xff] %v239
        %304 = vst [vmem:[%s51 + $0x48] sm:$0xff] %v240
        %305 = vst [vmem:[%s51 + $0x50] sm:$0xff] %v241
        %306 = vst [vmem:[%s51 + $0x58] sm:$0xff] %v242
        %307 = vst [vmem:[%s51 + $0x60] sm:$0xff] %v243
        %308 = vst [vmem:[%s51 + $0x68] sm:$0xff] %v244
        %309 = vst [vmem:[%s51 + $0x70] sm:$0xff] %v245
        %310 = vst [vmem:[%s51 + $0x78] sm:$0xff] %v246
        %311 = vst [vmem:[%s51 + $0x80] sm:$0xff] %v247
        %312 = vst [vmem:[%s51 + $0x88] sm:$0xff] %v248
        %313 = vst [vmem:[%s51 + $0x90] sm:$0xff] %v249
        %314 = vst [vmem:[%s51 + $0x98] sm:$0xff] %v250
        %315 = vst [vmem:[%s51 + $0xa0] sm:$0xff] %v251
        %316 = vst [vmem:[%s51 + $0xa8] sm:$0xff] %v252
        %317 = vst [vmem:[%s51 + $0xb0] sm:$0xff] %v253
        %318 = vst [vmem:[%s51 + $0xb8] sm:$0xff] %v254
        %319 = vst [vmem:[%s51 + $0xc0] sm:$0xff] %v255
        %320 = vst [vmem:[%s51 + $0xc8] sm:$0xff] %v256
        %321 = vst [vmem:[%s51 + $0xd0] sm:$0xff] %v257
        %322 = vst [vmem:[%s51 + $0xd8] sm:$0xff] %v258
        %323 = vst [vmem:[%s51 + $0xe0] sm:$0xff] %v259
        %324 = vst [vmem:[%s51 + $0xe8] sm:$0xff] %v260
        %325 = vst [vmem:[%s51 + $0xf0] sm:$0xff] %v261
        %326 = vst [vmem:[%s51 + $0xf8] sm:$0xff] %v262
        %327 = vst [vmem:[%s51 + $0x100] sm:$0xff] %v263
        %328 = vst [vmem:[%s51 + $0x108] sm:$0xff] %v264
        %329 = vst [vmem:[%s51 + $0x110] sm:$0xff] %v265
        %330 = vst [vmem:[%s51 + $0x118] sm:$0xff] %v266
        %331 = vst [vmem:[%s51 + $0x120] sm:$0xff] %v267
        %332 = vst [vmem:[%s51 + $0x128] sm:$0xff] %v268
        %333 = vst [vmem:[%s51 + $0x130] sm:$0xff] %v269
        %334 = vst [vmem:[%s51 + $0x138] sm:$0xff] %v270
        %335 = vst [vmem:[%s51 + $0x140] sm:$0xff] %v271
        %336 = vst [vmem:[%s51 + $0x148] sm:$0xff] %v272
        %337 = vst [vmem:[%s51 + $0x150] sm:$0xff] %v273
        %338 = vst [vmem:[%s51 + $0x158] sm:$0xff] %v274
        %339 = vst [vmem:[%s51 + $0x160] sm:$0xff] %v275
        %340 = vst [vmem:[%s51 + $0x168] sm:$0xff] %v276
        %341 = vst [vmem:[%s51 + $0x170] sm:$0xff] %v277
        %342 = vst [vmem:[%s51 + $0x178] sm:$0xff] %v278
        %343 = vst [vmem:[%s51 + $0x180] sm:$0xff] %v279
        %344 = vst [vmem:[%s51 + $0x188] sm:$0xff] %v280
        %345 = vst [vmem:[%s51 + $0x190] sm:$0xff] %v281
        %346 = vst [vmem:[%s51 + $0x198] sm:$0xff] %v282
        %347 = vst [vmem:[%s51 + $0x1a0] sm:$0xff] %v283
        %348 = vst [vmem:[%s51 + $0x1a8] sm:$0xff] %v284
        %349 = vst [vmem:[%s51 + $0x1b0] sm:$0xff] %v285
        %350 = vst [vmem:[%s51 + $0x1b8] sm:$0xff] %v286
        %351 = vst [vmem:[%s51 + $0x1c0] sm:$0xff] %v287
        %352 = vst [vmem:[%s51 + $0x1c8] sm:$0xff] %v288
        %353 = vst [vmem:[%s51 + $0x1d0] sm:$0xff] %v289
        %354 = vst [vmem:[%s51 + $0x1d8] sm:$0xff] %v290
        %355 = vst [vmem:[%s51 + $0x1e0] sm:$0xff] %v291
        %356 = vst [vmem:[%s51 + $0x1e8] sm:$0xff] %v292
        %357 = vst [vmem:[%s51 + $0x1f0] sm:$0xff] %v293
        %358 = vst [vmem:[%s51 + $0x1f8] sm:$0xff] %v294
        %s359 = sand.u32 %s24, 1
        %s360 = scalar_lea.sflag [#allocation7], %s359
        %s361 = sand.u32 %s24, 1
        %s362 = smul.addr %s361, 512
        %s363 = scalar_lea.vmem [#allocation6], %s362
        // Predicated region
        $region24: #{tpu_custom_call.1} parent=11 // pred_check
          %p364 = pneg %p30
        $region25: #{tpu_custom_call.1} parent=11 // pred_check_branch
          %366 = sbr.rel (%p364) target = $region27
        $region26: #{tpu_custom_call.1} parent=11 // pred_region
          %s367 = smul.u32 32, %s15
          %s369 = ssub.s32 8192, 8192
          %370 = vsyncadd %s360, %s369
          %s371 = smul.addr %s367, 2
          %s372 = smul.addr %s371, 128
          %s373 = scalar_lea.hbm %s2, %s372
          %s374 = sshll.u32 %s363, 4
          %s375 = int_to_ptr.vmem [resolvable:$true] %s374
          %380 = dma.vmem_to_hbm [thread:$0]  %s375, 8192, %s373, %s360, 256, 256, 16
        $region27: #{tpu_custom_call.1} parent=11 // pred_fallthru
          _
      $region12: #{tpu_custom_call.1} parent=5 // pred_fallthru
        _
      %p381 = scmp.le.s32.totalorder 1, %s15
      // Predicated region
      $region28: #{tpu_custom_call.1} parent=5 // pred_check
        %p382 = pneg %p381
      $region29: #{tpu_custom_call.1} parent=5 // pred_check_branch
        %384 = sbr.rel (%p382) target = $region31
      $region30: #{tpu_custom_call.1} parent=5 // pred_region
        %s385 = ssub.s32 %s15, 1
        // Predicated region
        $region32: #{tpu_custom_call.1} parent=30 // pred_check
          %p386 = pneg %p36
        $region33: #{tpu_custom_call.1} parent=30 // pred_check_branch
          %388 = sbr.rel (%p386) target = $region35
        $region34: #{tpu_custom_call.1} parent=30 // pred_region
          %s389 = sand.u32 %s27, 1
          %s390 = scalar_lea.sflag [#allocation7], %s389
          %s391 = sand.u32 %s27, 1
          %s392 = smul.addr %s391, 512
          %s393 = scalar_lea.vmem [#allocation6], %s392
          %394 = dma.done %s390, 8192
        $region35: #{tpu_custom_call.1} parent=30 // pred_fallthru
          _
      $region31: #{tpu_custom_call.1} parent=5 // pred_fallthru
        _
    $region6: #{tpu_custom_call.1} parent=1 // loop_footer
      %s19 = sadd.s32 1, %s15
    $region7: #{tpu_custom_call.1} parent=1 // loop_footer_branch
      %14 = sbr.rel target = $region3
    $region8: #{tpu_custom_call.1} parent=1 // loop_exit
      _
    %395 = vsyncpa [#allocation7], 1
    %s396 = scalar_lea.sflag [#allocation7], 1
    %397 = vsyncpa %s396, 1
  %398 = vsyncmov [#allocation3]
  %s399 = vpop.sfrf %398
  %p400 = scmp.eq.s32.totalorder %s399, 0
  %p401 = pneg %p400
  %403 = shalt.err (%p401)
  %s404 = scalar_lea.sflag [#allocation3], 1
  %405 = vsyncmov %s404
  %s406 = vpop.sfrf %405
  %p407 = scmp.eq.s32.totalorder %s406, 0
  %p408 = pneg %p407
  %410 = shalt.err (%p408)
  %s411 = scalar_lea.sflag [#allocation3], 2
  %412 = vsyncmov %s411
  %s413 = vpop.sfrf %412
  %p414 = scmp.eq.s32.totalorder %s413, 0
  %p415 = pneg %p414
  %417 = shalt.err (%p415)
  %s418 = scalar_lea.sflag [#allocation3], 3
  %419 = vsyncmov %s418
  %s420 = vpop.sfrf %419
  %p421 = scmp.eq.s32.totalorder %s420, 0
  %p422 = pneg %p421
  %424 = shalt.err (%p422)
  %s425 = scalar_lea.sflag [#allocation3], 4
  %426 = vsyncmov %s425
  %s427 = vpop.sfrf %426
  %p428 = scmp.eq.s32.totalorder %s427, 0
  %p429 = pneg %p428
  %431 = shalt.err (%p429)
  %s432 = scalar_lea.sflag [#allocation3], 5
  %433 = vsyncmov %s432
  %s434 = vpop.sfrf %433
  %p435 = scmp.eq.s32.totalorder %s434, 0
  %p436 = pneg %p435
  %438 = shalt.err (%p436)
  %s439 = scalar_lea.sflag [#allocation3], 6
  %440 = vsyncmov %s439
  %s441 = vpop.sfrf %440
  %p442 = scmp.eq.s32.totalorder %s441, 0
  %p443 = pneg %p442
  %445 = shalt.err (%p443)
  %s446 = scalar_lea.sflag [#allocation3], 7
  %447 = vsyncmov %s446
  %s448 = vpop.sfrf %447
  %p449 = scmp.eq.s32.totalorder %s448, 0
  %p450 = pneg %p449
  %452 = shalt.err (%p450)

</llo_original>
